<compile_context>
chip_gen: v7x
topology: tpu7x:2x2x1
jax: 0.10.0
libtpu: 0.0.40
codegen_flags: <defaults>
</compile_context>

<pallas_src>
import jax
import jax.numpy as jnp
from jax.experimental import pallas as pl
from jax.experimental.pallas import tpu as pltpu

_LANES = 128
# ~1 MiB per block: big enough to sit near the HBM roofline and amortize the
# ~0.35 us per-grid-step overhead, small enough that the complex path's
# 8 double-buffered blocks (8 MiB) fit every generation's scoped VMEM.
_TARGET_BLOCK_BYTES = 1 << 20


def _sublane_multiple(dtype) -> int:
    """Minimum second-to-last tile multiple for this dtype's sublane packing."""
    itemsize = jnp.dtype(dtype).itemsize
    return max(8, 32 // max(itemsize, 1))  # f32->8, bf16/f16->16, int8->32


def _max_row_tile(dtype) -> int:
    itemsize = jnp.dtype(dtype).itemsize
    return max(_sublane_multiple(dtype), _TARGET_BLOCK_BYTES // (_LANES * itemsize))


def _relu_kernel(x_ref, o_ref):
    o_ref[...] = jnp.maximum(x_ref[...], 0)


def _crelu_kernel(re_ref, im_ref, ore_ref, oim_ref):
    ore_ref[...] = jnp.maximum(re_ref[...], 0)
    oim_ref[...] = jnp.maximum(im_ref[...], 0)


def _to_slab(x):
    """Flatten to (rows, 128). Pads ONLY when size is not a 128 multiple."""
    flat = x.reshape(-1)
    n = flat.shape[0]
    n_pad = pl.cdiv(n, _LANES) * _LANES
    if n_pad != n:
        flat = jnp.pad(flat, (0, n_pad - n))
    return flat.reshape(-1, _LANES)


def _from_slab(slab, n, shape):
    flat = slab.reshape(-1)
    if flat.shape[0] != n:
        flat = flat[:n]
    return flat.reshape(shape)


def _row_tile(rows, dtype):
    """Sublane-aligned row tile <= ~1 MiB/block; even grid steps when split."""
    sub = _sublane_multiple(dtype)
    max_tr = _max_row_tile(dtype)
    if rows <= 2 * sub:
        return rows  # single full-extent block (legal even if not 8-aligned)
    steps = max(2, pl.cdiv(rows, max_tr))
    if steps % 2:
        steps += 1  # even step count -> v7x's two TensorCores split evenly
    tr = pl.cdiv(pl.cdiv(rows, steps), sub) * sub
    return max(sub, min(tr, max_tr))


def _pallas_elementwise(kernel, slabs, n_out):
    """Run an elementwise kernel over identically-shaped (rows, 128) slabs."""
    rows = slabs[0].shape[0]
    dtype = slabs[0].dtype
    itemsize = jnp.dtype(dtype).itemsize
    tr = _row_tile(rows, dtype)
    grid = (pl.cdiv(rows, tr),)  # ragged last block: OOB reads junk, OOB writes dropped
    spec = pl.BlockSpec((tr, _LANES), lambda i: (i, 0))
    out_sd = jax.ShapeDtypeStruct(slabs[0].shape, dtype)

    n_streams = len(slabs) + n_out
    block_bytes = tr * _LANES * itemsize
    live_bytes = n_streams * 2 * block_bytes           # double-buffered blocks
    vmem_limit = int(max(2 * live_bytes, 32 << 20))    # headroom, portable across gens
    plane_bytes = slabs[0].size * itemsize

    return pl.pallas_call(
        kernel,
        out_shape=out_sd if n_out == 1 else (out_sd,) * n_out,
        grid_spec=pltpu.PrefetchScalarGridSpec(
            num_scalar_prefetch=0,
            grid=grid,
            in_specs=[spec] * len(slabs),
            out_specs=spec if n_out == 1 else (spec,) * n_out,
        ),
        compiler_params=pltpu.CompilerParams(
            dimension_semantics=("parallel",),
            vmem_limit_bytes=vmem_limit),
        cost_estimate=pl.CostEstimate(
            flops=n_out * slabs[0].size,
            transcendentals=0,
            bytes_accessed=n_streams * plane_bytes),
    )(*slabs)


def crelu(x):
    """Complex ReLU: relu(real) + 1j*relu(imag). Real inputs get plain ReLU."""
    x = jnp.asarray(x)
    shape = x.shape
    if x.size == 0:
        return x

    if jnp.iscomplexobj(x):
        if x.dtype == jnp.complex128:
            # TPU Pallas has no float64; keep full precision via plain XLA ops.
            return jax.lax.complex(jnp.maximum(jnp.real(x), 0),
                                   jnp.maximum(jnp.imag(x), 0)).astype(x.dtype)
        # TODO(synk): jnp.real/jnp.imag extraction and lax.complex recombination
        # are XLA-side HBM passes around the kernel (~2x its own traffic); a
        # planar (..., 2) float activation layout in the surrounding model (or a
        # complex<->f32 bitcast, currently rejected by lax.bitcast_convert_type)
        # would remove this glue entirely.
        re = jnp.real(x)
        im = jnp.imag(x)
        n = re.size
        re_o, im_o = _pallas_elementwise(
            _crelu_kernel, [_to_slab(re), _to_slab(im)], n_out=2)
        return jax.lax.complex(_from_slab(re_o, n, shape),
                               _from_slab(im_o, n, shape)).astype(x.dtype)

    if x.dtype == jnp.float64:
        # No f64 on TPU Pallas; plain XLA keeps precision (and fuses for free).
        return jnp.maximum(x, 0)

    # TODO(synk): in a fused model graph a plain jnp.maximum(x, 0) would fuse
    # into producers/consumers for free; keep the standalone launch only when
    # CReLU really is an isolated HBM-bound op.
    n = x.size
    out = _pallas_elementwise(_relu_kernel, [_to_slab(x)], n_out=1)
    return _from_slab(out, n, shape)


class CReLU:
    """Pallas-backed complex ReLU module (no parameters)."""

    def __call__(self, x):
        return crelu(x)


if __name__ == "__main__":
    key = jax.random.PRNGKey(0)
    k_re, k_im, k_real = jax.random.split(key, 3)

    # NCHW complex input, small shape consistent with conv-style usage.
    shape = (2, 4, 16, 16)
    x_re = jax.random.normal(k_re, shape, dtype=jnp.float32)
    x_im = jax.random.normal(k_im, shape, dtype=jnp.float32)
    x = jax.lax.complex(x_re, x_im)  # complex64

    mod = CReLU()
    y = jax.block_until_ready(mod(x))

    ref = jax.lax.complex(jnp.maximum(x_re, 0.0), jnp.maximum(x_im, 0.0))
    assert y.shape == x.shape and y.dtype == x.dtype
    assert jnp.allclose(y, ref), "complex-path mismatch"

    # Real-valued float32 path (traditional relu).
    xr = jax.random.normal(k_real, shape, dtype=jnp.float32)
    yr = jax.block_until_ready(crelu(xr))
    assert yr.dtype == xr.dtype
    assert jnp.array_equal(yr, jnp.maximum(xr, 0.0)), "real-path mismatch"

    # Real-valued bf16 path stays in bf16 (no f32 upcast round-trip).
    xb = jax.random.normal(k_real, shape, dtype=jnp.bfloat16)
    yb = jax.block_until_ready(crelu(xb))
    assert yb.dtype == jnp.bfloat16
    assert jnp.array_equal(yb, jnp.maximum(xb, 0)), "bf16-path mismatch"

    # Size that needs a 128-lane pad (1155 elements) -> single full block.
    xu = jax.random.normal(k_real, (3, 5, 7, 11), dtype=jnp.float32)
    yu = jax.block_until_ready(crelu(xu))
    assert jnp.array_equal(yu, jnp.maximum(xu, 0.0)), "unaligned-path mismatch"

    # 24-row slab split into 2 blocks of 16 rows -> exercises ragged last block.
    xg = jax.random.normal(k_real, (3, 8, 128), dtype=jnp.float32)
    yg = jax.block_until_ready(crelu(xg))
    assert jnp.array_equal(yg, jnp.maximum(xg, 0.0)), "ragged-block mismatch"

    print("KERNEL_OK")
</pallas_src>

<mosaic_0001>
module attributes {stable_mosaic.version = 11 : i64} {
  func.func @_crelu_kernel(%arg0: i32, %arg1: memref<16x128xf32, #tpu.memory_space<vmem>>, %arg2: memref<16x128xf32, #tpu.memory_space<vmem>>, %arg3: memref<16x128xf32, #tpu.memory_space<vmem>>, %arg4: memref<16x128xf32, #tpu.memory_space<vmem>>) attributes {dimension_semantics = [#tpu.dimension_semantics<parallel>], iteration_bounds = array<i64: 1>, scalar_prefetch = 0 : i64, scratch_operands = 0 : i64, tpu.core_type = #tpu.core_type<tc>, window_params = [{transform_indices = @transform_0, window_bounds = array<i64: 16, 128>}, {transform_indices = @transform_1, window_bounds = array<i64: 16, 128>}, {transform_indices = @transform_2, window_bounds = array<i64: 16, 128>}, {transform_indices = @transform_3, window_bounds = array<i64: 16, 128>}]} {
    %c0 = arith.constant 0 : index
    %c0_0 = arith.constant 0 : index
    %0 = vector.load %arg1[%c0, %c0_0] : memref<16x128xf32, #tpu.memory_space<vmem>>, vector<16x128xf32>
    %cst = arith.constant 0.000000e+00 : f32
    %1 = vector.broadcast %cst : f32 to vector<16x128xf32>
    %2 = arith.maximumf %0, %1 : vector<16x128xf32>
    %c0_1 = arith.constant 0 : index
    %c0_2 = arith.constant 0 : index
    %3 = vector.load %arg3[%c0_1, %c0_2] : memref<16x128xf32, #tpu.memory_space<vmem>>, vector<16x128xf32>
    tpu.vector_store %arg3[%c0_1, %c0_2], %2 {strides = array<i32>} : memref<16x128xf32, #tpu.memory_space<vmem>>, vector<16x128xf32>,
    %c0_3 = arith.constant 0 : index
    %c0_4 = arith.constant 0 : index
    %4 = vector.load %arg2[%c0_3, %c0_4] : memref<16x128xf32, #tpu.memory_space<vmem>>, vector<16x128xf32>
    %cst_5 = arith.constant 0.000000e+00 : f32
    %5 = vector.broadcast %cst_5 : f32 to vector<16x128xf32>
    %6 = arith.maximumf %4, %5 : vector<16x128xf32>
    %c0_6 = arith.constant 0 : index
    %c0_7 = arith.constant 0 : index
    %7 = vector.load %arg4[%c0_6, %c0_7] : memref<16x128xf32, #tpu.memory_space<vmem>>, vector<16x128xf32>
    tpu.vector_store %arg4[%c0_6, %c0_7], %6 {strides = array<i32>} : memref<16x128xf32, #tpu.memory_space<vmem>>, vector<16x128xf32>,
    return
  }
  func.func @transform_0(%arg0: i32) -> (i32, i32) {
    %c0_i32 = arith.constant 0 : i32
    %c0_i32_0 = arith.constant 0 : i32
    return %arg0, %c0_i32 : i32, i32
  }
  func.func @transform_1(%arg0: i32) -> (i32, i32) {
    %c0_i32 = arith.constant 0 : i32
    %c0_i32_0 = arith.constant 0 : i32
    return %arg0, %c0_i32 : i32, i32
  }
  func.func @transform_2(%arg0: i32) -> (i32, i32) {
    %c0_i32 = arith.constant 0 : i32
    %c0_i32_0 = arith.constant 0 : i32
    return %arg0, %c0_i32 : i32, i32
  }
  func.func @transform_3(%arg0: i32) -> (i32, i32) {
    %c0_i32 = arith.constant 0 : i32
    %c0_i32_0 = arith.constant 0 : i32
    return %arg0, %c0_i32 : i32, i32
  }
}

</mosaic_0001>

<llo_original>
// kernel: tpu_custom_call.1
$region0: #{tpu_custom_call.1}
  #allocation0 [shape = 'u32[]', space=smem, size = 0x4, offset = 0x4, fixed_abs, tag = 'smem constant byte address 0x4 - core index']
  #allocation1 [shape = 'u32[144,128]{1,0:T(1,128)}', space=vmem, size = 0x12000, scoped, tag = 'internal scratch']
  %s0 = inlined_call_operand.hbm [shape: f32[16,128], index: 0, kind: input, shape index: {}]
  %s1 = inlined_call_operand.hbm [shape: f32[16,128], index: 1, kind: input, shape index: {}]
  %s2 = inlined_call_operand.hbm [shape: f32[16,128], index: 2, kind: output, shape index: {0}]
  %s3 = inlined_call_operand.hbm [shape: f32[16,128], index: 3, kind: output, shape index: {1}]
  %4 = xla_tuple %s2, %s3
  %s5 = sld [smem:[#allocation0]]
  $region34: #{tpu_custom_call.1} parent=0
    _
  %s7 = ssub.s32 1, %s5
  %s8 = scalar_select 0, %s7, %s5
  $region1: #{tpu_custom_call.1} parent=0
    #allocation2 [shape = 'u8[8192]{0}', space=vmem, size = 0x2000, scoped, tag = 'input window, operand 0, single buffered']
    #allocation3 [shape = 's32[1]{0}', space=sflag, size = 0x4, scoped, tag = 'scoped memory for tpu_custom_call.1']
    #allocation4 [shape = 's32[1]{0}', space=sflag, size = 0x4, scoped, tag = 'scoped memory for tpu_custom_call.1']
    #allocation5 [shape = 'u8[8192]{0}', space=vmem, size = 0x2000, scoped, tag = 'input window, operand 1, single buffered']
    #allocation6 [shape = 's32[1]{0}', space=sflag, size = 0x4, scoped, tag = 'scoped memory for tpu_custom_call.1']
    #allocation7 [shape = 'u8[8192]{0}', space=vmem, size = 0x2000, scoped, tag = 'output window, operand 0, single buffered']
    #allocation8 [shape = 'u8[8192]{0}', space=vmem, size = 0x2000, scoped, tag = 'output window, operand 1, single buffered']
    #allocation9 [shape = 's32[1]{0}', space=sflag, size = 0x4, scoped, tag = 'scoped memory for tpu_custom_call.1']
    %9 = vsyncpa [#allocation3], 0
    %10 = vsyncpa [#allocation6], 0
    %11 = vsyncpa [#allocation4], 0
    %12 = vsyncpa [#allocation9], 0
    // Predicated region
    $region2: #{tpu_custom_call.1} parent=1 // pred_check
      _
    $region3: #{tpu_custom_call.1} parent=1 // pred_check_branch
      %14 = sbr.rel (0) target = $region5
    $region4: #{tpu_custom_call.1} parent=1 // pred_region
      %s16 = ssub.s32 256, 256
      %17 = vsyncadd [#allocation3], %s16
      %s18 = sshll.u32 [#allocation2], 4
      %s19 = int_to_ptr.vmem [resolvable:$true] %s18
      %24 = dma.hbm_to_vmem [thread:$0]  %s0, 256, %s19, [#allocation3], 128, 128, 8
    $region5: #{tpu_custom_call.1} parent=1 // pred_fallthru
      _
    // Predicated region
    $region6: #{tpu_custom_call.1} parent=1 // pred_check
      _
    $region7: #{tpu_custom_call.1} parent=1 // pred_check_branch
      %26 = sbr.rel (0) target = $region9
    $region8: #{tpu_custom_call.1} parent=1 // pred_region
      %s28 = ssub.s32 256, 256
      %29 = vsyncadd [#allocation6], %s28
      %s30 = sshll.u32 [#allocation5], 4
      %s31 = int_to_ptr.vmem [resolvable:$true] %s30
      %36 = dma.hbm_to_vmem [thread:$0]  %s1, 256, %s31, [#allocation6], 128, 128, 8
    $region9: #{tpu_custom_call.1} parent=1 // pred_fallthru
      _
    // Predicated region
    $region10: #{tpu_custom_call.1} parent=1 // pred_check
      _
    $region11: #{tpu_custom_call.1} parent=1 // pred_check_branch
      %38 = sbr.rel (0) target = $region13
    $region12: #{tpu_custom_call.1} parent=1 // pred_region
      %39 = dma.done [#allocation3], 256
    $region13: #{tpu_custom_call.1} parent=1 // pred_fallthru
      _
    // Predicated region
    $region14: #{tpu_custom_call.1} parent=1 // pred_check
      _
    $region15: #{tpu_custom_call.1} parent=1 // pred_check_branch
      %41 = sbr.rel (0) target = $region17
    $region16: #{tpu_custom_call.1} parent=1 // pred_region
      %42 = dma.done [#allocation6], 256
    $region17: #{tpu_custom_call.1} parent=1 // pred_fallthru
      _
    %v43 = vld [vmem:[#allocation2] sm:$0xff]
    %v44 = vld [vmem:[#allocation2 + $0x8] sm:$0xff]
    %v45 = vmax.f32 %v43, 0.0
    %v46 = vmax.f32 %v44, 0.0
    %47 = vst [vmem:[#allocation7] sm:$0xff] %v45
    %48 = vst [vmem:[#allocation7 + $0x8] sm:$0xff] %v46
    %v49 = vld [vmem:[#allocation5] sm:$0xff]
    %v50 = vld [vmem:[#allocation5 + $0x8] sm:$0xff]
    %v51 = vmax.f32 %v49, 0.0
    %v52 = vmax.f32 %v50, 0.0
    %53 = vst [vmem:[#allocation8] sm:$0xff] %v51
    %54 = vst [vmem:[#allocation8 + $0x8] sm:$0xff] %v52
    // Predicated region
    $region18: #{tpu_custom_call.1} parent=1 // pred_check
      _
    $region19: #{tpu_custom_call.1} parent=1 // pred_check_branch
      %56 = sbr.rel (0) target = $region21
    $region20: #{tpu_custom_call.1} parent=1 // pred_region
      %s58 = ssub.s32 256, 256
      %59 = vsyncadd [#allocation4], %s58
      %s60 = sshll.u32 [#allocation7], 4
      %s61 = int_to_ptr.vmem [resolvable:$true] %s60
      %66 = dma.vmem_to_hbm [thread:$0]  %s61, 256, %s2, [#allocation4], 128, 128, 8
    $region21: #{tpu_custom_call.1} parent=1 // pred_fallthru
      _
    // Predicated region
    $region22: #{tpu_custom_call.1} parent=1 // pred_check
      _
    $region23: #{tpu_custom_call.1} parent=1 // pred_check_branch
      %68 = sbr.rel (0) target = $region25
    $region24: #{tpu_custom_call.1} parent=1 // pred_region
      %s70 = ssub.s32 256, 256
      %71 = vsyncadd [#allocation9], %s70
      %s72 = sshll.u32 [#allocation8], 4
      %s73 = int_to_ptr.vmem [resolvable:$true] %s72
      %78 = dma.vmem_to_hbm [thread:$0]  %s73, 256, %s3, [#allocation9], 128, 128, 8
    $region25: #{tpu_custom_call.1} parent=1 // pred_fallthru
      _
    // Predicated region
    $region26: #{tpu_custom_call.1} parent=1 // pred_check
      _
    $region27: #{tpu_custom_call.1} parent=1 // pred_check_branch
      %80 = sbr.rel (0) target = $region29
    $region28: #{tpu_custom_call.1} parent=1 // pred_region
      %81 = dma.done [#allocation4], 256
    $region29: #{tpu_custom_call.1} parent=1 // pred_fallthru
      _
    // Predicated region
    $region30: #{tpu_custom_call.1} parent=1 // pred_check
      _
    $region31: #{tpu_custom_call.1} parent=1 // pred_check_branch
      %83 = sbr.rel (0) target = $region33
    $region32: #{tpu_custom_call.1} parent=1 // pred_region
      %84 = dma.done [#allocation9], 256
    $region33: #{tpu_custom_call.1} parent=1 // pred_fallthru
      _
    %85 = vsyncpa [#allocation3], 1
    %86 = vsyncpa [#allocation6], 1
    %87 = vsyncpa [#allocation4], 1
    %88 = vsyncpa [#allocation9], 1

</llo_original>
